<compile_context>
chip_gen: v7x
topology: tpu7x:2x2x1
jax: 0.10.0
libtpu: 0.0.40
codegen_flags: <defaults>
</compile_context>

<pallas_src>
import functools

import jax
import jax.numpy as jnp
from jax import lax
from jax.experimental import pallas as pl
from jax.experimental.pallas import tpu as pltpu


def _cdiv(a, b):
    return -(-a // b)


def _norm_matmul_kernel(x_ref, w_ref, o_ref, acc_ref, sx_ref, sw_ref, *,
                        normalised, s, eps2):
    """Grid (i, j, k): accumulate x_tile @ w_tile^T and the row sums-of-squares
    over k; normalize + scale once in the k==last epilogue.

    x_ref  : (tm, tk)  matmul dtype (bf16 by default)
    w_ref  : (tn, tk)  matmul dtype
    o_ref  : (tm, tn)  output tile
    acc_ref: (tm, tn)  f32 matmul accumulator
    sx_ref : (tm, 1)   f32 running sum(x_row^2)
    sw_ref : (8, tn)   f32 running sum(w_row^2) (identical rows)
    """
    k = pl.program_id(2)

    @pl.when(k == 0)
    def _():
        acc_ref[...] = jnp.zeros_like(acc_ref)
        if normalised:
            sx_ref[...] = jnp.zeros_like(sx_ref)
            sw_ref[...] = jnp.zeros_like(sw_ref)

    x = x_ref[...]
    w = w_ref[...]

    # MXU: contract both operands on their last (lane) axis, f32 accumulation.
    acc_ref[...] += lax.dot_general(
        x, w, dimension_numbers=(((1,), (1,)), ((), ())),
        preferred_element_type=jnp.float32)

    if normalised:
        # x-row sum of squares: VPU square in f32 + lane reduce -> (tm, 1).
        xf = x.astype(jnp.float32)
        sx_ref[...] += jnp.sum(xf * xf, axis=1, keepdims=True)
        # w-row sum of squares, already in row orientation:
        # ones(8, tk) @ (w*w)^T -> (8, tn); tiny extra MXU work (~8/tm of the
        # main matmul) and avoids any (tn,1)->(1,tn) relayout in the epilogue.
        wsq = w * w
        ones = jnp.ones((8, wsq.shape[1]), dtype=wsq.dtype)
        sw_ref[...] += lax.dot_general(
            ones, wsq, dimension_numbers=(((1,), (1,)), ((), ())),
            preferred_element_type=jnp.float32)

    @pl.when(k == pl.num_programs(2) - 1)
    def _():
        acc = acc_ref[...]
        if normalised:
            inv_x = lax.rsqrt(jnp.maximum(sx_ref[...], eps2))           # (tm, 1)
            inv_w = lax.rsqrt(jnp.maximum(sw_ref[0:1, :], eps2)) * s    # (1, tn)
            acc = acc * inv_x * inv_w
        elif s != 1.0:
            acc = acc * s
        o_ref[...] = acc.astype(o_ref.dtype)


def _vmem_capacity_bytes():
    """Physical VMEM capacity; conservative 64 MiB (v7x per-TC) fallback."""
    try:
        info = pltpu.get_tpu_info()
        cap = int(getattr(info, "vmem_capacity_bytes", 0))
        if cap > 0:
            return cap
    except Exception:
        pass
    return 64 << 20


def _pick_tile(requested, dim, mult):
    """(8,128)-legal tile; prefer a divisor of `dim` so no padding is needed."""
    if dim <= requested:
        return dim                                # full-extent block: always legal
    t = max(mult, (requested // mult) * mult)     # round down to a legal multiple
    if dim % t == 0:
        return t
    c = t
    while c >= max(mult, t // 2):                 # look for a divisor within 2x
        if dim % c == 0:
            return c
        c -= mult
    return t                                      # fall back to padding


def linear_forward(x, weight, label=None, s=1.0, *, normalised=True,
                   eps=1e-12, tm=None, tn=None, tk=None, matmul_dtype=None):
    """Pallas wrapper mirroring Linear.forward(x, label, s)."""
    del label  # only used for batch_size in the reference; no effect on output
    M, K = x.shape
    N, Kw = weight.shape
    assert K == Kw, "in_features mismatch"

    out_dtype = jnp.result_type(x.dtype, weight.dtype)

    # bf16 MXU operands by default for f32 inputs (f32 accumulation/norms).
    if matmul_dtype is None:
        matmul_dtype = jnp.bfloat16 if out_dtype == jnp.float32 else out_dtype
    matmul_dtype = jnp.dtype(matmul_dtype)
    x_mm = x.astype(matmul_dtype)
    w_mm = weight.astype(matmul_dtype)

    vmem_cap = _vmem_capacity_bytes()
    big_vmem = vmem_cap >= (96 << 20)   # v5e / v6e: 128 MiB; v7x: 64 MiB per TC

    # Roofline-sized defaults (clamped / rounded below).
    if tm is None:
        tm = 1024 if big_vmem else 512
    if tn is None:
        tn = 2048 if big_vmem else 1024
    if tk is None:
        tk = K if K <= 2048 else 1024

    tm = _pick_tile(int(tm), M, 8)
    tn = _pick_tile(int(tn), N, 128)
    tk = _pick_tile(int(tk), K, 128)

    # v7x has 2 TensorCores: if the whole batch fits in a single i block
    # (typical classifier head), make sure the j axis has >=2 parallel blocks.
    if _cdiv(M, tm) == 1:
        while _cdiv(N, tn) < 2 and tn >= 256:
            tn = max(128, ((tn // 2) // 128) * 128)

    Mp = _cdiv(M, tm) * tm
    Np = _cdiv(N, tn) * tn
    Kp = _cdiv(K, tk) * tk
    # Zero padding leaves both the matmul and the row norms unchanged.
    if (Mp, Kp) != (M, K):
        x_mm = jnp.pad(x_mm, ((0, Mp - M), (0, Kp - K)))
    if (Np, Kp) != (N, K):
        w_mm = jnp.pad(w_mm, ((0, Np - N), (0, Kp - K)))

    grid = (Mp // tm, Np // tn, Kp // tk)

    # Scoped-VMEM budget from the real footprint, clamped to physical capacity.
    in_bytes = matmul_dtype.itemsize
    out_bytes = jnp.dtype(out_dtype).itemsize
    footprint = (2 * (tm * tk + tn * tk) * in_bytes      # double-buffered operands
                 + 2 * tm * tn * out_bytes               # double-buffered output
                 + tm * tn * 4 + (tm + 8 * tn) * 4)      # f32 scratches
    vmem_limit = max(int(footprint * 5 // 4) + (2 << 20), 32 << 20)
    vmem_limit = int(min(vmem_limit, int(vmem_cap * 0.85), 128 << 20))

    kernel = functools.partial(
        _norm_matmul_kernel,
        normalised=bool(normalised), s=float(s), eps2=float(eps) ** 2)

    out = pl.pallas_call(
        kernel,
        out_shape=jax.ShapeDtypeStruct((Mp, Np), out_dtype),
        grid_spec=pltpu.PrefetchScalarGridSpec(
            num_scalar_prefetch=0,
            grid=grid,
            in_specs=[
                pl.BlockSpec((tm, tk), lambda i, j, k: (i, k)),   # x tile
                pl.BlockSpec((tn, tk), lambda i, j, k: (j, k)),   # weight tile
            ],
            out_specs=pl.BlockSpec((tm, tn), lambda i, j, k: (i, j)),
            scratch_shapes=[
                pltpu.VMEM((tm, tn), jnp.float32),   # matmul accumulator
                pltpu.VMEM((tm, 1), jnp.float32),    # sum(x_row^2)
                pltpu.VMEM((8, tn), jnp.float32),    # sum(w_row^2)
            ],
        ),
        compiler_params=pltpu.CompilerParams(
            dimension_semantics=("parallel", "parallel", "arbitrary"),
            vmem_limit_bytes=vmem_limit),
    )(x_mm, w_mm)

    if (Mp, Np) != (M, N):
        out = out[:M, :N]
    return out


def xavier_uniform(key, out_features, in_features, dtype=jnp.float32):
    """Deterministic nn.init.xavier_uniform_ equivalent for (out, in) weight."""
    bound = (6.0 / (in_features + out_features)) ** 0.5
    return jax.random.uniform(key, (out_features, in_features), dtype,
                              minval=-bound, maxval=bound)


# TODO(synk): the device_id/multi_flag multi-GPU chunking path is a data-layout
# concern only (same math); it has no single-kernel Pallas equivalent here.


if __name__ == "__main__":
    # Small shapes consistent with the module: batch=8, in_features=32,
    # classification head with out_features=16.
    batch, in_features, out_features = 8, 32, 16
    s_scale = 2.0

    key = jax.random.PRNGKey(0)
    kx, kw = jax.random.split(key)
    x = jax.random.normal(kx, (batch, in_features), dtype=jnp.float32)
    weight = xavier_uniform(kw, out_features, in_features)
    label = jnp.zeros((batch,), dtype=jnp.int32)  # unused by the math, as in torch

    # Pure-JAX reference of the torch semantics.
    def ref(x, w, s, eps=1e-12):
        xn = x / jnp.maximum(jnp.linalg.norm(x, axis=1, keepdims=True), eps)
        wn = w / jnp.maximum(jnp.linalg.norm(w, axis=1, keepdims=True), eps)
        return (xn @ wn.T) * s

    expected = ref(x, weight, s_scale)

    # Default (performance) path: bf16 MXU operands, f32 accumulation / norms.
    out = jax.block_until_ready(
        linear_forward(x, weight, label, s=s_scale, normalised=True))
    assert out.shape == (batch, out_features)
    assert out.dtype == expected.dtype
    assert jnp.allclose(out, expected, atol=5e-2, rtol=5e-2), (
        float(jnp.max(jnp.abs(out - expected))))

    # Exact path: keep MXU operands in f32.
    out32 = jax.block_until_ready(
        linear_forward(x, weight, label, s=s_scale, normalised=True,
                       matmul_dtype=jnp.float32))
    assert jnp.allclose(out32, expected, atol=2e-4, rtol=2e-4), (
        float(jnp.max(jnp.abs(out32 - expected))))

    print("KERNEL_OK")
</pallas_src>

<mosaic_0001>
module attributes {stable_mosaic.version = 11 : i64} {
  func.func @_norm_matmul_kernel(%arg0: i32, %arg1: i32, %arg2: i32, %arg3: memref<8x32xbf16, #tpu.memory_space<vmem>>, %arg4: memref<16x32xbf16, #tpu.memory_space<vmem>>, %arg5: memref<8x16xf32, #tpu.memory_space<vmem>>, %arg6: memref<8x16xf32, #tpu.memory_space<vmem>>, %arg7: memref<8x1xf32, #tpu.memory_space<vmem>>, %arg8: memref<8x16xf32, #tpu.memory_space<vmem>>) attributes {dimension_semantics = [#tpu.dimension_semantics<parallel>, #tpu.dimension_semantics<parallel>, #tpu.dimension_semantics<arbitrary>], iteration_bounds = array<i64: 1, 1, 1>, scalar_prefetch = 0 : i64, scratch_operands = 3 : i64, tpu.core_type = #tpu.core_type<tc>, window_params = [{transform_indices = @transform_0, window_bounds = array<i64: 8, 32>}, {transform_indices = @transform_1, window_bounds = array<i64: 16, 32>}, {transform_indices = @transform_2, window_bounds = array<i64: 8, 16>}]} {
    %c0_i32 = arith.constant 0 : i32
    %0 = arith.cmpi eq, %arg2, %c0_i32 : i32
    %1 = arith.extui %0 : i1 to i32
    %c0_i32_0 = arith.constant 0 : i32
    %2 = arith.cmpi ne, %1, %c0_i32_0 : i32
    scf.if %2 {
      %cst_21 = arith.constant 0.000000e+00 : f32
      %25 = vector.broadcast %cst_21 : f32 to vector<8x16xf32>
      %c0_22 = arith.constant 0 : index
      %c0_23 = arith.constant 0 : index
      %26 = vector.load %arg6[%c0_22, %c0_23] : memref<8x16xf32, #tpu.memory_space<vmem>>, vector<8x16xf32>
      tpu.vector_store %arg6[%c0_22, %c0_23], %25 {strides = array<i32>} : memref<8x16xf32, #tpu.memory_space<vmem>>, vector<8x16xf32>,
      %cst_24 = arith.constant 0.000000e+00 : f32
      %27 = vector.broadcast %cst_24 : f32 to vector<8x1xf32>
      %c0_25 = arith.constant 0 : index
      %c0_26 = arith.constant 0 : index
      %28 = vector.load %arg7[%c0_25, %c0_26] : memref<8x1xf32, #tpu.memory_space<vmem>>, vector<8x1xf32>
      tpu.vector_store %arg7[%c0_25, %c0_26], %27 {strides = array<i32>} : memref<8x1xf32, #tpu.memory_space<vmem>>, vector<8x1xf32>,
      %cst_27 = arith.constant 0.000000e+00 : f32
      %29 = vector.broadcast %cst_27 : f32 to vector<8x16xf32>
      %c0_28 = arith.constant 0 : index
      %c0_29 = arith.constant 0 : index
      %30 = vector.load %arg8[%c0_28, %c0_29] : memref<8x16xf32, #tpu.memory_space<vmem>>, vector<8x16xf32>
      tpu.vector_store %arg8[%c0_28, %c0_29], %29 {strides = array<i32>} : memref<8x16xf32, #tpu.memory_space<vmem>>, vector<8x16xf32>,
    } else {
    }
    %c0 = arith.constant 0 : index
    %c0_1 = arith.constant 0 : index
    %3 = vector.load %arg3[%c0, %c0_1] : memref<8x32xbf16, #tpu.memory_space<vmem>>, vector<8x32xbf16>
    %c0_2 = arith.constant 0 : index
    %c0_3 = arith.constant 0 : index
    %4 = vector.load %arg4[%c0_2, %c0_3] : memref<16x32xbf16, #tpu.memory_space<vmem>>, vector<16x32xbf16>
    %c0_4 = arith.constant 0 : index
    %c0_5 = arith.constant 0 : index
    %5 = vector.load %arg6[%c0_4, %c0_5] : memref<8x16xf32, #tpu.memory_space<vmem>>, vector<8x16xf32>
    %cst = arith.constant dense<0.000000e+00> : vector<8x16xf32>
    %6 = tpu.matmul %3, %4, %cst {dimension_numbers = #tpu.dot_dimension_numbers<[1], [1], [0], [0], [0, 0, 1, 0], [], []>} : vector<8x32xbf16>, vector<16x32xbf16>, vector<8x16xf32> -> vector<8x16xf32>
    %7 = arith.addf %5, %6 : vector<8x16xf32>
    %c0_6 = arith.constant 0 : index
    %c0_7 = arith.constant 0 : index
    %8 = vector.load %arg6[%c0_6, %c0_7] : memref<8x16xf32, #tpu.memory_space<vmem>>, vector<8x16xf32>
    tpu.vector_store %arg6[%c0_6, %c0_7], %7 {strides = array<i32>} : memref<8x16xf32, #tpu.memory_space<vmem>>, vector<8x16xf32>,
    %9 = arith.extf %3 : vector<8x32xbf16> to vector<8x32xf32>
    %c0_8 = arith.constant 0 : index
    %c0_9 = arith.constant 0 : index
    %10 = vector.load %arg7[%c0_8, %c0_9] : memref<8x1xf32, #tpu.memory_space<vmem>>, vector<8x1xf32>
    %11 = arith.mulf %9, %9 : vector<8x32xf32>
    %cst_10 = arith.constant dense<0.000000e+00> : vector<8xf32>
    %12 = vector.multi_reduction <add>, %11, %cst_10 [1] : vector<8x32xf32> to vector<8xf32>
    %13 = vector.shape_cast %12 : vector<8xf32> to vector<8x1xf32>
    %14 = arith.addf %10, %13 : vector<8x1xf32>
    %c0_11 = arith.constant 0 : index
    %c0_12 = arith.constant 0 : index
    %15 = vector.load %arg7[%c0_11, %c0_12] : memref<8x1xf32, #tpu.memory_space<vmem>>, vector<8x1xf32>
    tpu.vector_store %arg7[%c0_11, %c0_12], %14 {strides = array<i32>} : memref<8x1xf32, #tpu.memory_space<vmem>>, vector<8x1xf32>,
    %16 = arith.mulf %4, %4 : vector<16x32xbf16>
    %cst_13 = arith.constant 1.000000e+00 : bf16
    %17 = vector.broadcast %cst_13 : bf16 to vector<8x32xbf16>
    %c0_14 = arith.constant 0 : index
    %c0_15 = arith.constant 0 : index
    %18 = vector.load %arg8[%c0_14, %c0_15] : memref<8x16xf32, #tpu.memory_space<vmem>>, vector<8x16xf32>
    %cst_16 = arith.constant dense<0.000000e+00> : vector<8x16xf32>
    %19 = tpu.matmul %17, %16, %cst_16 {dimension_numbers = #tpu.dot_dimension_numbers<[1], [1], [0], [0], [0, 0, 1, 0], [], []>} : vector<8x32xbf16>, vector<16x32xbf16>, vector<8x16xf32> -> vector<8x16xf32>
    %20 = arith.addf %18, %19 : vector<8x16xf32>
    %c0_17 = arith.constant 0 : index
    %c0_18 = arith.constant 0 : index
    %21 = vector.load %arg8[%c0_17, %c0_18] : memref<8x16xf32, #tpu.memory_space<vmem>>, vector<8x16xf32>
    tpu.vector_store %arg8[%c0_17, %c0_18], %20 {strides = array<i32>} : memref<8x16xf32, #tpu.memory_space<vmem>>, vector<8x16xf32>,
    %c0_i32_19 = arith.constant 0 : i32
    %22 = arith.cmpi eq, %arg2, %c0_i32_19 : i32
    %23 = arith.extui %22 : i1 to i32
    %c0_i32_20 = arith.constant 0 : i32
    %24 = arith.cmpi ne, %23, %c0_i32_20 : i32
    scf.if %24 {
      %c0_21 = arith.constant 0 : index
      %c0_22 = arith.constant 0 : index
      %25 = vector.load %arg6[%c0_21, %c0_22] : memref<8x16xf32, #tpu.memory_space<vmem>>, vector<8x16xf32>
      %c0_23 = arith.constant 0 : index
      %c0_24 = arith.constant 0 : index
      %26 = vector.load %arg7[%c0_23, %c0_24] : memref<8x1xf32, #tpu.memory_space<vmem>>, vector<8x1xf32>
      %cst_25 = arith.constant 1.000000e-24 : f32
      %27 = vector.broadcast %cst_25 : f32 to vector<8x1xf32>
      %28 = arith.maximumf %26, %27 : vector<8x1xf32>
      %29 = math.rsqrt %28 : vector<8x1xf32>
      %c0_26 = arith.constant 0 : index
      %c0_27 = arith.constant 0 : index
      %30 = vector.load %arg8[%c0_26, %c0_27] : memref<8x16xf32, #tpu.memory_space<vmem>>, vector<1x16xf32>
      %cst_28 = arith.constant 1.000000e-24 : f32
      %31 = vector.broadcast %cst_28 : f32 to vector<1x16xf32>
      %32 = arith.maximumf %30, %31 : vector<1x16xf32>
      %33 = math.rsqrt %32 : vector<1x16xf32>
      %cst_29 = arith.constant 2.000000e+00 : f32
      %34 = vector.broadcast %cst_29 : f32 to vector<1x16xf32>
      %35 = arith.mulf %33, %34 : vector<1x16xf32>
      %36 = vector.broadcast %29 : vector<8x1xf32> to vector<8x16xf32>
      %37 = arith.mulf %25, %36 : vector<8x16xf32>
      %38 = vector.broadcast %35 : vector<1x16xf32> to vector<8x16xf32>
      %39 = arith.mulf %37, %38 : vector<8x16xf32>
      %c0_30 = arith.constant 0 : index
      %c0_31 = arith.constant 0 : index
      %40 = vector.load %arg5[%c0_30, %c0_31] : memref<8x16xf32, #tpu.memory_space<vmem>>, vector<8x16xf32>
      tpu.vector_store %arg5[%c0_30, %c0_31], %39 {strides = array<i32>} : memref<8x16xf32, #tpu.memory_space<vmem>>, vector<8x16xf32>,
    } else {
    }
    return
  }
  func.func @transform_0(%arg0: i32, %arg1: i32, %arg2: i32) -> (i32, i32) {
    %c0_i32 = arith.constant 0 : i32
    return %arg0, %arg2 : i32, i32
  }
  func.func @transform_1(%arg0: i32, %arg1: i32, %arg2: i32) -> (i32, i32) {
    %c0_i32 = arith.constant 0 : i32
    return %arg1, %arg2 : i32, i32
  }
  func.func @transform_2(%arg0: i32, %arg1: i32, %arg2: i32) -> (i32, i32) {
    %c0_i32 = arith.constant 0 : i32
    return %arg0, %arg1 : i32, i32
  }
}

</mosaic_0001>

<llo_original>
// kernel: tpu_custom_call.1
$region0: #{tpu_custom_call.1}
  #allocation0 [shape = 'u32[]', space=smem, size = 0x4, offset = 0x4, fixed_abs, tag = 'smem constant byte address 0x4 - core index']
  #allocation1 [shape = 'u32[144,128]{1,0:T(1,128)}', space=vmem, size = 0x12000, scoped, tag = 'internal scratch']
  #allocation2 [shape = 'f32[8,16]{1,0:T(8,128)}', space=vmem, size = 0x1000, scoped, tag = 'scratch operand']
  #allocation3 [shape = 'f32[8,1]{1,0:T(8,128)}', space=vmem, size = 0x1000, scoped, tag = 'scratch operand']
  #allocation4 [shape = 'f32[8,16]{1,0:T(8,128)}', space=vmem, size = 0x1000, scoped, tag = 'scratch operand']
  %s0 = inlined_call_operand.hbm [shape: bf16[8,32], index: 0, kind: input, shape index: {}]
  %s1 = inlined_call_operand.hbm [shape: bf16[16,32], index: 1, kind: input, shape index: {}]
  %s2 = inlined_call_operand.hbm [shape: f32[8,16], index: 2, kind: output, shape index: {}]
  %s3 = sld [smem:[#allocation0]]
  $region34: #{tpu_custom_call.1} parent=0
    _
  %s5 = ssub.s32 1, %s3
  %s6 = scalar_select 0, %s5, %s3
  $region1: #{tpu_custom_call.1} parent=0
    #allocation5 [shape = 'u8[2048]{0}', space=vmem, size = 0x800, scoped, tag = 'input window, operand 0, single buffered']
    #allocation6 [shape = 's32[1]{0}', space=sflag, size = 0x4, scoped, tag = 'scoped memory for tpu_custom_call.1']
    #allocation7 [shape = 's32[1]{0}', space=sflag, size = 0x4, scoped, tag = 'scoped memory for tpu_custom_call.1']
    #allocation8 [shape = 'u8[4096]{0}', space=vmem, size = 0x1000, scoped, tag = 'input window, operand 1, single buffered']
    #allocation9 [shape = 's32[1]{0}', space=sflag, size = 0x4, scoped, tag = 'scoped memory for tpu_custom_call.1']
    #allocation10 [shape = 'u8[4096]{0}', space=vmem, size = 0x1000, scoped, tag = 'output window, operand 0, single buffered']
    %7 = vsyncpa [#allocation6], 0
    %8 = vsyncpa [#allocation9], 0
    %9 = vsyncpa [#allocation7], 0
    // Predicated region
    $region2: #{tpu_custom_call.1} parent=1 // pred_check
      _
    $region3: #{tpu_custom_call.1} parent=1 // pred_check_branch
      %11 = sbr.rel (0) target = $region5
    $region4: #{tpu_custom_call.1} parent=1 // pred_region
      %s13 = ssub.s32 64, 64
      %14 = vsyncadd [#allocation6], %s13
      %s16 = sshll.u32 [#allocation5], 4
      %s17 = int_to_ptr.vmem [resolvable:$true] %s16
      %19 = dma.hbm_to_vmem [thread:$0]  %s0, 64, %s17, [#allocation6]
    $region5: #{tpu_custom_call.1} parent=1 // pred_fallthru
      _
    // Predicated region
    $region6: #{tpu_custom_call.1} parent=1 // pred_check
      _
    $region7: #{tpu_custom_call.1} parent=1 // pred_check_branch
      %21 = sbr.rel (0) target = $region9
    $region8: #{tpu_custom_call.1} parent=1 // pred_region
      %s23 = ssub.s32 128, 128
      %24 = vsyncadd [#allocation9], %s23
      %s25 = sshll.u32 [#allocation8], 4
      %s26 = int_to_ptr.vmem [resolvable:$true] %s25
      %31 = dma.hbm_to_vmem [thread:$0]  %s1, 128, %s26, [#allocation9], 64, 64, 4
    $region9: #{tpu_custom_call.1} parent=1 // pred_fallthru
      _
    // Predicated region
    $region10: #{tpu_custom_call.1} parent=1 // pred_check
      _
    $region11: #{tpu_custom_call.1} parent=1 // pred_check_branch
      %33 = sbr.rel (0) target = $region13
    $region12: #{tpu_custom_call.1} parent=1 // pred_region
      %34 = dma.done [#allocation6], 64
    $region13: #{tpu_custom_call.1} parent=1 // pred_fallthru
      _
    // Predicated region
    $region14: #{tpu_custom_call.1} parent=1 // pred_check
      _
    $region15: #{tpu_custom_call.1} parent=1 // pred_check_branch
      %36 = sbr.rel (0) target = $region17
    $region16: #{tpu_custom_call.1} parent=1 // pred_region
      %37 = dma.done [#allocation9], 128
    $region17: #{tpu_custom_call.1} parent=1 // pred_fallthru
      _
    %p40 = scmp.eq.s32.totalorder 0, 0
    // Predicated region
    $region18: #{tpu_custom_call.1} parent=1 // pred_check
      %p41 = pneg %p40
    $region19: #{tpu_custom_call.1} parent=1 // pred_check_branch
      %43 = sbr.rel (%p41) target = $region21
    $region20: #{tpu_custom_call.1} parent=1 // pred_region
      %vm44 = vcmask 130048
      %45 = vst.msk [vmem:[#allocation2] sm:$0xff] %vm44, 0.0
      %vm46 = vcmask 7168
      %47 = vst.msk [vmem:[#allocation3] sm:$0xff] %vm46, 0.0
      %48 = vst.msk [vmem:[#allocation4] sm:$0xff] %vm44, 0.0
    $region21: #{tpu_custom_call.1} parent=1 // pred_fallthru
      _
    %v49 = vld [vmem:[#allocation5] sm:$0xf]
    %v50 = vld [vmem:[#allocation8] sm:$0xf]
    %v51 = vld [vmem:[#allocation8 + $0x4] sm:$0xf]
    %v52 = vld [vmem:[#allocation2] sm:$0xff]
    %v55 = vunpack.c.l.b16 %v50
    %v56 = vunpack.c.l.b16 %v51
    %v57 = vpack.c.b16 %v56, %v55
    %vm58 = vcmask 261120
    %v60 = vsel %vm58, %v49, 0
    %v63 = vsel %vm58, %v57, 0
    %65 = vmatprep.subr.bf16.mxu0 0
    %66 = vmatpush1.bf16.xpose.msra.mxu0 %v63
    %67 = vmatprep.subr.bf16.mxu0 0
    %68 = vmatpush1.bf16.xpose.msra.mxu0 0
    %69 = vmatprep.subr.bf16.mxu0 0
    %70 = vmatpush1.bf16.xpose.msra.mxu0 0
    %71 = vmatprep.subr.bf16.mxu0 0
    %72 = vmatpush1.bf16.xpose.msra.mxu0 0
    %73 = vmatprep.subr.bf16.mxu0 0
    %74 = vmatpush1.bf16.xpose.msra.mxu0 0
    %75 = vmatprep.subr.bf16.mxu0 0
    %76 = vmatpush1.bf16.xpose.msra.mxu0 0
    %77 = vmatprep.subr.bf16.mxu0 0
    %78 = vmatpush1.bf16.xpose.msra.mxu0 0
    %79 = vmatprep.subr.bf16.mxu0 0
    %80 = vmatpush1.bf16.xpose.msra.mxu0 0
    %81 = vmatprep.subr.bf16.mxu0 0
    %82 = vmatpush1.bf16.xpose.msra.mxu0 0
    %83 = vmatprep.subr.bf16.mxu0 0
    %84 = vmatpush1.bf16.xpose.msra.mxu0 0
    %85 = vmatprep.subr.bf16.mxu0 0
    %86 = vmatpush1.bf16.xpose.msra.mxu0 0
    %87 = vmatprep.subr.bf16.mxu0 0
    %88 = vmatpush1.bf16.xpose.msra.mxu0 0
    %89 = vmatprep.subr.bf16.mxu0 0
    %90 = vmatpush1.bf16.xpose.msra.mxu0 0
    %91 = vmatprep.subr.bf16.mxu0 0
    %92 = vmatpush1.bf16.xpose.msra.mxu0 0
    %93 = vmatprep.subr.bf16.mxu0 0
    %94 = vmatpush1.bf16.xpose.msra.mxu0 0
    %95 = vmatprep.subr.bf16.mxu0 0
    %96 = vmatpush1.bf16.xpose.msra.mxu0 0
    %97 = vmatprep.mubr.bf16.mxu0 0
    %98 = vmatmul.mubr.bf16.gmra.mrb[0].mxu0 %v60
    %v99 = vpop.f32.mrb[0].mxu0
    %v100 = vadd.f32 0.0, %v99
    %v101 = vpop.f32.mrb[0].mxu0
    %v102 = vpop.f32.mrb[0].mxu0
    %v103 = vpop.f32.mrb[0].mxu0
    %104 = vdwg.mxu0
    %v105 = vadd.f32 %v52, %v100
    %vm106 = vcmask 130048
    %107 = vst.msk [vmem:[#allocation2] sm:$0xff] %vm106, %v105
    %v108 = vunpack.c.l.bf16 %v49
    %v109 = vld [vmem:[#allocation3] sm:$0xff]
    %v110 = vmul.f32 %v108, %v108
    %v111 = vsel %vm58, %v110, 0.0
    %112 = vadd.xlane.f32.xlu0 %v111
    %v113 = vpop.xlane.xlu0 %112
    %v114 = vadd.f32 %v109, %v113
    %vm115 = vcmask 7168
    %116 = vst.msk [vmem:[#allocation3] sm:$0xff] %vm115, %v114
    %v117 = vmul.bf16 %v50, %v50
    %v118 = vmul.bf16 %v51, %v51
    %v119 = vld [vmem:[#allocation4] sm:$0xff]
    %v122 = vunpack.c.l.b16 %v117
    %v123 = vunpack.c.l.b16 %v118
    %v124 = vpack.c.b16 %v123, %v122
    %v126 = vsel %vm58, 1065369472, 0
    %v129 = vsel %vm58, %v124, 0
    %131 = vmatprep.subr.bf16.mxu0 0
    %132 = vmatpush1.bf16.xpose.msra.mxu0 %v129
    %133 = vmatprep.subr.bf16.mxu0 0
    %134 = vmatpush1.bf16.xpose.msra.mxu0 0
    %135 = vmatprep.subr.bf16.mxu0 0
    %136 = vmatpush1.bf16.xpose.msra.mxu0 0
    %137 = vmatprep.subr.bf16.mxu0 0
    %138 = vmatpush1.bf16.xpose.msra.mxu0 0
    %139 = vmatprep.subr.bf16.mxu0 0
    %140 = vmatpush1.bf16.xpose.msra.mxu0 0
    %141 = vmatprep.subr.bf16.mxu0 0
    %142 = vmatpush1.bf16.xpose.msra.mxu0 0
    %143 = vmatprep.subr.bf16.mxu0 0
    %144 = vmatpush1.bf16.xpose.msra.mxu0 0
    %145 = vmatprep.subr.bf16.mxu0 0
    %146 = vmatpush1.bf16.xpose.msra.mxu0 0
    %147 = vmatprep.subr.bf16.mxu0 0
    %148 = vmatpush1.bf16.xpose.msra.mxu0 0
    %149 = vmatprep.subr.bf16.mxu0 0
    %150 = vmatpush1.bf16.xpose.msra.mxu0 0
    %151 = vmatprep.subr.bf16.mxu0 0
    %152 = vmatpush1.bf16.xpose.msra.mxu0 0
    %153 = vmatprep.subr.bf16.mxu0 0
    %154 = vmatpush1.bf16.xpose.msra.mxu0 0
    %155 = vmatprep.subr.bf16.mxu0 0
    %156 = vmatpush1.bf16.xpose.msra.mxu0 0
    %157 = vmatprep.subr.bf16.mxu0 0
    %158 = vmatpush1.bf16.xpose.msra.mxu0 0
    %159 = vmatprep.subr.bf16.mxu0 0
    %160 = vmatpush1.bf16.xpose.msra.mxu0 0
    %161 = vmatprep.subr.bf16.mxu0 0
    %162 = vmatpush1.bf16.xpose.msra.mxu0 0
    %163 = vmatprep.mubr.bf16.mxu0 0
    %164 = vmatmul.mubr.bf16.gmra.mrb[0].mxu0 %v126
    %v165 = vpop.f32.mrb[0].mxu0
    %v166 = vadd.f32 0.0, %v165
    %v167 = vpop.f32.mrb[0].mxu0
    %v168 = vpop.f32.mrb[0].mxu0
    %v169 = vpop.f32.mrb[0].mxu0
    %170 = vdwg.mxu0
    %v171 = vadd.f32 %v119, %v166
    %172 = vst.msk [vmem:[#allocation4] sm:$0xff] %vm106, %v171
    // Predicated region
    $region22: #{tpu_custom_call.1} parent=1 // pred_check
      %p173 = pneg %p40
    $region23: #{tpu_custom_call.1} parent=1 // pred_check_branch
      %175 = sbr.rel (%p173) target = $region25
    $region24: #{tpu_custom_call.1} parent=1 // pred_region
      %v176 = vld [vmem:[#allocation2] sm:$0xff]
      %v177 = vld [vmem:[#allocation3] sm:$0xff]
      %v178 = vmax.f32 %v177, 1e-24
      %v179 = vrsqrt.pop %v178
      %v180 = vld [vmem:[#allocation4] sm:$0x1]
      %v181 = vmax.f32 %v180, 1e-24
      %v182 = vrsqrt.pop %v181
      %v183 = vmul.f32 %v182, 2.0
      %185 = vset.pattern.permute.xlu0 0
      %186 = vperm.xlu0 %185, %v179
      %v187 = vpop.permute.xlu0 %186
      %v189 = vmul.f32 %v176, %v187
      %v190 = vlaneseq
      %v191 = vshrl.u32 %v190, 7
      %v192 = vsub.s32 0, %v191
      %v193 = vrot.slane %v183, %v192
      %v194 = vmul.f32 %v189, %v193
      %195 = vst.msk [vmem:[#allocation10] sm:$0xff] %vm106, %v194
    $region25: #{tpu_custom_call.1} parent=1 // pred_fallthru
      _
    // Predicated region
    $region26: #{tpu_custom_call.1} parent=1 // pred_check
      _
    $region27: #{tpu_custom_call.1} parent=1 // pred_check_branch
      %197 = sbr.rel (0) target = $region29
    $region28: #{tpu_custom_call.1} parent=1 // pred_region
      %s199 = ssub.s32 128, 128
      %200 = vsyncadd [#allocation7], %s199
      %s202 = sshll.u32 [#allocation10], 4
      %s203 = int_to_ptr.vmem [resolvable:$true] %s202
      %205 = dma.vmem_to_hbm [thread:$0]  %s203, 128, %s2, [#allocation7]
    $region29: #{tpu_custom_call.1} parent=1 // pred_fallthru
      _
    // Predicated region
    $region30: #{tpu_custom_call.1} parent=1 // pred_check
      _
    $region31: #{tpu_custom_call.1} parent=1 // pred_check_branch
      %207 = sbr.rel (0) target = $region33
    $region32: #{tpu_custom_call.1} parent=1 // pred_region
      %208 = dma.done [#allocation7], 128
    $region33: #{tpu_custom_call.1} parent=1 // pred_fallthru
      _
    %209 = vsyncpa [#allocation6], 1
    %210 = vsyncpa [#allocation9], 1
    %211 = vsyncpa [#allocation7], 1

</llo_original>
